<compile_context>
chip_gen: v6e
topology: v6e:2x2x1
jax: 0.10.0
libtpu: 0.0.40
codegen_flags: <defaults>
</compile_context>

<pallas_src>
import functools

import jax
import jax.numpy as jnp
from jax.experimental import pallas as pl
from jax.experimental.pallas import tpu as pltpu


def _round_up(x, m):
    return (x + m - 1) // m * m


# --------------------------- conv matmul kernel ------------------------------

def _conv_bnstats_kernel(a_ref, b_ref, o_ref, sum_ref, ssq_ref):
    """(tm, K)bf16 @ (K, Cpad)bf16 -> (tm, Cpad)bf16, plus per-channel sum/sumsq."""
    @pl.when(pl.program_id(0) == 0)
    def _init():
        sum_ref[...] = jnp.zeros_like(sum_ref)
        ssq_ref[...] = jnp.zeros_like(ssq_ref)

    acc = jnp.dot(a_ref[...], b_ref[...], preferred_element_type=jnp.float32)
    o_ref[...] = acc.astype(o_ref.dtype)
    # BN statistics as free VPU/XLU filler under the MXU (stats stay f32).
    sum_ref[...] += jnp.sum(acc, axis=0, keepdims=True)
    ssq_ref[...] += jnp.sum(acc * acc, axis=0, keepdims=True)


def conv_matmul_with_stats(patches, w_mat, *, tm):
    m_pad, k = patches.shape
    _, cpad = w_mat.shape
    return pl.pallas_call(
        _conv_bnstats_kernel,
        out_shape=(jax.ShapeDtypeStruct((m_pad, cpad), jnp.bfloat16),
                   jax.ShapeDtypeStruct((1, cpad), jnp.float32),
                   jax.ShapeDtypeStruct((1, cpad), jnp.float32)),
        grid_spec=pltpu.PrefetchScalarGridSpec(
            num_scalar_prefetch=0,
            grid=(m_pad // tm,),
            in_specs=[pl.BlockSpec((tm, k), lambda i: (i, 0)),
                      pl.BlockSpec((k, cpad), lambda i: (0, 0))],
            out_specs=(pl.BlockSpec((tm, cpad), lambda i: (i, 0)),
                       pl.BlockSpec((1, cpad), lambda i: (0, 0)),
                       pl.BlockSpec((1, cpad), lambda i: (0, 0))),
        ),
        # The grid axis is a reduction for the stat outputs -> sequential.
        compiler_params=pltpu.CompilerParams(dimension_semantics=("arbitrary",)),
    )(patches, w_mat)


# --------------------- fused BN + Mish + dropout kernel -----------------------

# murmur3 fmix32 constants written as signed int32.
_MIX1 = -2048144789   # 0x85EBCA6B
_MIX2 = -1028477387   # 0xC2B2AE35
_GOLD = -1640531527   # 0x9E3779B9


def _hash_bits31(idx, seed):
    """Murmur-style avalanche of int32 element index mixed with a scalar seed.

    Logical right shifts are emulated as arithmetic shift + mask so only plain
    int32 VPU ops are needed (works on Mosaic and in interpret mode).
    Returns non-negative 31-bit values, ~uniform on [0, 2^31).
    """
    h = idx ^ (seed * jnp.int32(_GOLD))
    h = h ^ ((h >> 16) & jnp.int32(0xFFFF))
    h = h * jnp.int32(_MIX1)
    h = h ^ ((h >> 13) & jnp.int32(0x7FFFF))
    h = h * jnp.int32(_MIX2)
    h = h ^ ((h >> 16) & jnp.int32(0xFFFF))
    return h & jnp.int32(0x7FFFFFFF)


def _bn_mish_dropout_kernel(seed_ref, x_ref, scale_ref, shift_ref, o_ref, *,
                            p, apply_dropout):
    # bf16 in, f32 math, f32 out (v5e has no bf16 VPU/EUP path).
    y = x_ref[...].astype(jnp.float32) * scale_ref[...] + shift_ref[...]

    # Mish: y * tanh(softplus(y)); single exp on the EUP, rest on the VPU.
    #   tanh(log(1+t)) = ((1+t)^2 - 1) / ((1+t)^2 + 1) = g / (g + 2),  g = t^2 + 2t
    t = jnp.exp(jnp.minimum(y, 20.0))          # mish(y) ~= y for y > 20
    g = t * (t + 2.0)
    y = y * (g / (g + 2.0))

    if apply_dropout:
        rows = jax.lax.broadcasted_iota(jnp.int32, y.shape, 0)
        cols = jax.lax.broadcasted_iota(jnp.int32, y.shape, 1)
        # Global element index -> decorrelated across tiles and elements.
        idx = (pl.program_id(0) * y.shape[0] + rows) * y.shape[1] + cols
        u = _hash_bits31(idx, seed_ref[0])
        thr = jnp.int32(int(round(p * 2147483648.0)))     # p * 2^31
        y = jnp.where(u >= thr, y * (1.0 / (1.0 - p)), 0.0)

    o_ref[...] = y.astype(o_ref.dtype)


def bn_mish_dropout(conv, scale, shift, seed, *, tm, p, apply_dropout):
    m_pad, cpad = conv.shape
    kern = functools.partial(_bn_mish_dropout_kernel, p=p,
                             apply_dropout=apply_dropout)
    return pl.pallas_call(
        kern,
        out_shape=jax.ShapeDtypeStruct((m_pad, cpad), jnp.float32),
        grid_spec=pltpu.PrefetchScalarGridSpec(
            num_scalar_prefetch=1,                         # dropout seed -> SMEM
            grid=(m_pad // tm,),
            in_specs=[pl.BlockSpec((tm, cpad), lambda i, s: (i, 0)),
                      pl.BlockSpec((1, cpad), lambda i, s: (0, 0)),
                      pl.BlockSpec((1, cpad), lambda i, s: (0, 0))],
            out_specs=pl.BlockSpec((tm, cpad), lambda i, s: (i, 0)),
        ),
        # Tiles are independent: "parallel" lets v7x use both TensorCores.
        compiler_params=pltpu.CompilerParams(dimension_semantics=("parallel",)),
    )(seed, conv, scale, shift)


# ------------------------------- JAX glue ------------------------------------

def _im2col_nhwc(x_nhwc, k, pad):
    """Stride-1 im2col; flattened patch feature order is (dy, dx, cin)."""
    n, h, w, c = x_nhwc.shape
    xp = jnp.pad(x_nhwc, ((0, 0), (pad, pad), (pad, pad), (0, 0)))
    cols = [xp[:, dy:dy + h, dx:dx + w, :] for dy in range(k) for dx in range(k)]
    patches = jnp.concatenate(cols, axis=-1)              # (N, H, W, k*k*C)
    return patches.reshape(n * h * w, k * k * c)


def _choose_tm(m, k_feat, cpad, budget_bytes=20 * 2**20):
    """Largest row tile (<=1024, multiple of 8) whose double-buffered blocks fit
    comfortably in scoped VMEM (v7x: 64 MiB total / 32 MiB default scoped)."""
    k_lanes = max(_round_up(k_feat, 128), 128)
    tm = min(1024, _round_up(m, 8))

    def step_bytes(t):
        conv_step = t * (k_lanes * 2 + cpad * 2)           # patches + conv out (bf16)
        epi_step = t * cpad * (2 + 4)                      # bf16 in + f32 out
        return 2 * max(conv_step, epi_step)                # double-buffered

    while tm > 64 and step_bytes(tm) > budget_bytes:
        tm = _round_up(tm // 2, 8)
    return max(tm, 8)


class CnnBlockPallas:
    """Pallas port of the PyTorch CnnBlock (training-mode forward)."""

    def __init__(self, inplanes, planes, kernel_size=3, stride=1, padding=1,
                 eps=1e-5, momentum=0.1, seed=42):
        assert stride == 1, "only stride=1 is implemented (module default)"
        self.inplanes = inplanes
        self.planes = planes
        self.k = kernel_size
        self.pad = padding
        self.eps = eps
        self.momentum = momentum
        key = jax.random.PRNGKey(seed)
        fan_in = inplanes * kernel_size * kernel_size
        # Conv2d weight (Cout, Cin, kH, kW), no bias — deterministic init.
        self.w = (jax.random.normal(
            key, (planes, inplanes, kernel_size, kernel_size), jnp.float32)
            * fan_in ** -0.5)
        # BatchNorm2d params / buffers (PyTorch defaults).
        self.gamma = jnp.ones((planes,), jnp.float32)
        self.beta = jnp.zeros((planes,), jnp.float32)
        self.running_mean = jnp.zeros((planes,), jnp.float32)
        self.running_var = jnp.ones((planes,), jnp.float32)

    def __call__(self, x_nchw, dropout_seed=0, training=True):
        # Training-mode forward (BN uses batch statistics, as in module.train()).
        # `training` gates only the dropout mask (the spec's F.dropout(out, 0.1)
        # is always-on); set training=False to get a deterministic output.
        n, c, h, w = x_nchw.shape
        assert c == self.inplanes
        m = n * h * w
        k_feat = self.k * self.k * self.inplanes
        cpad = _round_up(self.planes, 128)         # lane-dense output channels
        tm = _choose_tm(m, k_feat, cpad)
        m_pad = _round_up(m, tm)

        # --- im2col in bf16 (K kept at its natural size: full-dim blocks are
        #     legal and padding K would only inflate the dominant HBM stream) ---
        x_nhwc = jnp.transpose(x_nchw, (0, 2, 3, 1)).astype(jnp.bfloat16)
        patches = _im2col_nhwc(x_nhwc, self.k, self.pad)          # (M, K) bf16
        patches = jnp.pad(patches, ((0, m_pad - m), (0, 0)))      # zero tail rows

        # weight as (K, Cpad) bf16; feature order (dy, dx, cin) matches patches.
        w_mat = jnp.transpose(self.w, (2, 3, 1, 0)).reshape(k_feat, self.planes)
        w_mat = jnp.pad(w_mat, ((0, 0), (0, cpad - self.planes))).astype(jnp.bfloat16)

        # --- conv matmul + fused BN statistics (Pallas, MXU) ---
        conv, csum, cssq = conv_matmul_with_stats(patches, w_mat, tm=tm)

        # --- tiny (Cpad,)-sized reduction tail in plain JAX ---
        mean = csum[0] / m                         # divide by the *real* M
        var = jnp.maximum(cssq[0] / m - mean * mean, 0.0)   # biased, torch-style
        gamma = jnp.pad(self.gamma, (0, cpad - self.planes), constant_values=1.0)
        beta = jnp.pad(self.beta, (0, cpad - self.planes))
        scale = gamma * jax.lax.rsqrt(var + self.eps)
        shift = beta - mean * scale

        if training:   # keep the stateful nn.BatchNorm2d behavior
            mom = self.momentum
            unbiased = var[:self.planes] * (m / max(m - 1, 1))
            self.running_mean = (1 - mom) * self.running_mean + mom * mean[:self.planes]
            self.running_var = (1 - mom) * self.running_var + mom * unbiased

        # --- fused BN affine + Mish + dropout (Pallas, VPU/EUP) ---
        seed = jnp.asarray([dropout_seed], jnp.int32)
        out = bn_mish_dropout(conv, scale.reshape(1, cpad), shift.reshape(1, cpad),
                              seed, tm=tm, p=0.1, apply_dropout=training)

        # slice the row / channel padding off only at the very end
        out = out[:m, :self.planes].reshape(n, h, w, self.planes)
        return jnp.transpose(out, (0, 3, 1, 2))    # back to NCHW


# --------------------------------- main ---------------------------------------

def _reference_forward(x_nchw, w, gamma, beta, eps):
    """Pure-JAX f32 reference: conv -> BN(batch stats) -> Mish (no dropout)."""
    conv = jax.lax.conv_general_dilated(
        x_nchw, w, window_strides=(1, 1), padding=((1, 1), (1, 1)),
        dimension_numbers=("NCHW", "OIHW", "NCHW"))
    mean = conv.mean(axis=(0, 2, 3), keepdims=True)
    var = ((conv - mean) ** 2).mean(axis=(0, 2, 3), keepdims=True)
    y = (conv - mean) * jax.lax.rsqrt(var + eps)
    y = y * gamma.reshape(1, -1, 1, 1) + beta.reshape(1, -1, 1, 1)
    return y * jnp.tanh(jax.nn.softplus(y))


if __name__ == "__main__":
    key = jax.random.PRNGKey(0)
    x = jax.random.normal(key, (2, 4, 16, 16), jnp.float32)   # NCHW like PyTorch

    block = CnnBlockPallas(inplanes=4, planes=8, kernel_size=3, stride=1, padding=1)

    # Sanity check vs the pure-JAX reference with dropout disabled
    # (loose tolerance: the Pallas path runs the matmul in bf16).
    y_ref = _reference_forward(x, block.w, block.gamma, block.beta, block.eps)
    y_nodrop = jax.block_until_ready(block(x, training=False))
    assert y_nodrop.shape == y_ref.shape
    assert bool(jnp.allclose(y_nodrop, y_ref, rtol=0.1, atol=0.1)), \
        "Pallas output does not match the JAX reference"

    # Training-mode forward: BN batch stats + Mish + dropout p=0.1.
    y = jax.block_until_ready(block(x, dropout_seed=123, training=True))
    assert y.shape == (2, 8, 16, 16)
    assert bool(jnp.all(jnp.isfinite(y)))
    drop_frac = float(jnp.mean(y == 0.0))
    assert 0.02 < drop_frac < 0.25, f"unexpected dropout rate {drop_frac}"
    print("KERNEL_OK")
</pallas_src>

<mosaic_0001>
module attributes {stable_mosaic.version = 11 : i64} {
  func.func @_conv_bnstats_kernel(%arg0: i32, %arg1: memref<512x36xbf16, #tpu.memory_space<vmem>>, %arg2: memref<36x128xbf16, #tpu.memory_space<vmem>>, %arg3: memref<512x128xbf16, #tpu.memory_space<vmem>>, %arg4: memref<1x128xf32, #tpu.memory_space<vmem>>, %arg5: memref<1x128xf32, #tpu.memory_space<vmem>>) attributes {dimension_semantics = [#tpu.dimension_semantics<arbitrary>], iteration_bounds = array<i64: 1>, scalar_prefetch = 0 : i64, scratch_operands = 0 : i64, tpu.core_type = #tpu.core_type<tc>, window_params = [{transform_indices = @transform_0, window_bounds = array<i64: 512, 36>}, {pipeline_mode = #tpu.pipeline_mode<synchronous>, transform_indices = @transform_1, window_bounds = array<i64: 36, 128>}, {transform_indices = @transform_2, window_bounds = array<i64: 512, 128>}, {pipeline_mode = #tpu.pipeline_mode<synchronous>, transform_indices = @transform_3, window_bounds = array<i64: 1, 128>}, {pipeline_mode = #tpu.pipeline_mode<synchronous>, transform_indices = @transform_4, window_bounds = array<i64: 1, 128>}]} {
    %c0_i32 = arith.constant 0 : i32
    %0 = arith.cmpi eq, %arg0, %c0_i32 : i32
    %1 = arith.extui %0 : i1 to i32
    %c0_i32_0 = arith.constant 0 : i32
    %2 = arith.cmpi ne, %1, %c0_i32_0 : i32
    scf.if %2 {
      %cst_16 = arith.constant 0.000000e+00 : f32
      %19 = vector.broadcast %cst_16 : f32 to vector<1x128xf32>
      %c0_17 = arith.constant 0 : index
      %c0_18 = arith.constant 0 : index
      %20 = vector.load %arg4[%c0_17, %c0_18] : memref<1x128xf32, #tpu.memory_space<vmem>>, vector<1x128xf32>
      tpu.vector_store %arg4[%c0_17, %c0_18], %19 {strides = array<i32>} : memref<1x128xf32, #tpu.memory_space<vmem>>, vector<1x128xf32>,
      %cst_19 = arith.constant 0.000000e+00 : f32
      %21 = vector.broadcast %cst_19 : f32 to vector<1x128xf32>
      %c0_20 = arith.constant 0 : index
      %c0_21 = arith.constant 0 : index
      %22 = vector.load %arg5[%c0_20, %c0_21] : memref<1x128xf32, #tpu.memory_space<vmem>>, vector<1x128xf32>
      tpu.vector_store %arg5[%c0_20, %c0_21], %21 {strides = array<i32>} : memref<1x128xf32, #tpu.memory_space<vmem>>, vector<1x128xf32>,
    } else {
    }
    %c0 = arith.constant 0 : index
    %c0_1 = arith.constant 0 : index
    %3 = vector.load %arg1[%c0, %c0_1] : memref<512x36xbf16, #tpu.memory_space<vmem>>, vector<512x36xbf16>
    %c0_2 = arith.constant 0 : index
    %c0_3 = arith.constant 0 : index
    %4 = vector.load %arg2[%c0_2, %c0_3] : memref<36x128xbf16, #tpu.memory_space<vmem>>, vector<36x128xbf16>
    %cst = arith.constant dense<0.000000e+00> : vector<512x128xf32>
    %5 = tpu.matmul %3, %4, %cst {dimension_numbers = #tpu.dot_dimension_numbers<[1], [0], [0], [1], [0, 0, 1, 1], [], []>} : vector<512x36xbf16>, vector<36x128xbf16>, vector<512x128xf32> -> vector<512x128xf32>
    %6 = arith.truncf %5 : vector<512x128xf32> to vector<512x128xbf16>
    %c0_4 = arith.constant 0 : index
    %c0_5 = arith.constant 0 : index
    %7 = vector.load %arg3[%c0_4, %c0_5] : memref<512x128xbf16, #tpu.memory_space<vmem>>, vector<512x128xbf16>
    tpu.vector_store %arg3[%c0_4, %c0_5], %6 {strides = array<i32>} : memref<512x128xbf16, #tpu.memory_space<vmem>>, vector<512x128xbf16>,
    %c0_6 = arith.constant 0 : index
    %c0_7 = arith.constant 0 : index
    %8 = vector.load %arg4[%c0_6, %c0_7] : memref<1x128xf32, #tpu.memory_space<vmem>>, vector<1x128xf32>
    %cst_8 = arith.constant dense<0.000000e+00> : vector<128xf32>
    %9 = vector.multi_reduction <add>, %5, %cst_8 [0] : vector<512x128xf32> to vector<128xf32>
    %10 = vector.shape_cast %9 : vector<128xf32> to vector<1x128xf32>
    %11 = arith.addf %8, %10 : vector<1x128xf32>
    %c0_9 = arith.constant 0 : index
    %c0_10 = arith.constant 0 : index
    %12 = vector.load %arg4[%c0_9, %c0_10] : memref<1x128xf32, #tpu.memory_space<vmem>>, vector<1x128xf32>
    tpu.vector_store %arg4[%c0_9, %c0_10], %11 {strides = array<i32>} : memref<1x128xf32, #tpu.memory_space<vmem>>, vector<1x128xf32>,
    %c0_11 = arith.constant 0 : index
    %c0_12 = arith.constant 0 : index
    %13 = vector.load %arg5[%c0_11, %c0_12] : memref<1x128xf32, #tpu.memory_space<vmem>>, vector<1x128xf32>
    %14 = arith.mulf %5, %5 : vector<512x128xf32>
    %cst_13 = arith.constant dense<0.000000e+00> : vector<128xf32>
    %15 = vector.multi_reduction <add>, %14, %cst_13 [0] : vector<512x128xf32> to vector<128xf32>
    %16 = vector.shape_cast %15 : vector<128xf32> to vector<1x128xf32>
    %17 = arith.addf %13, %16 : vector<1x128xf32>
    %c0_14 = arith.constant 0 : index
    %c0_15 = arith.constant 0 : index
    %18 = vector.load %arg5[%c0_14, %c0_15] : memref<1x128xf32, #tpu.memory_space<vmem>>, vector<1x128xf32>
    tpu.vector_store %arg5[%c0_14, %c0_15], %17 {strides = array<i32>} : memref<1x128xf32, #tpu.memory_space<vmem>>, vector<1x128xf32>,
    return
  }
  func.func @transform_0(%arg0: i32) -> (i32, i32) {
    %c0_i32 = arith.constant 0 : i32
    %c0_i32_0 = arith.constant 0 : i32
    return %arg0, %c0_i32 : i32, i32
  }
  func.func @transform_1(%arg0: i32) -> (i32, i32) {
    %c0_i32 = arith.constant 0 : i32
    %c0_i32_0 = arith.constant 0 : i32
    %c0_i32_1 = arith.constant 0 : i32
    return %c0_i32, %c0_i32_0 : i32, i32
  }
  func.func @transform_2(%arg0: i32) -> (i32, i32) {
    %c0_i32 = arith.constant 0 : i32
    %c0_i32_0 = arith.constant 0 : i32
    return %arg0, %c0_i32 : i32, i32
  }
  func.func @transform_3(%arg0: i32) -> (i32, i32) {
    %c0_i32 = arith.constant 0 : i32
    %c0_i32_0 = arith.constant 0 : i32
    %c0_i32_1 = arith.constant 0 : i32
    return %c0_i32, %c0_i32_0 : i32, i32
  }
  func.func @transform_4(%arg0: i32) -> (i32, i32) {
    %c0_i32 = arith.constant 0 : i32
    %c0_i32_0 = arith.constant 0 : i32
    %c0_i32_1 = arith.constant 0 : i32
    return %c0_i32, %c0_i32_0 : i32, i32
  }
}

</mosaic_0001>

<llo_original>
// kernel: tpu_custom_call.1
$region0: #{tpu_custom_call.1}
  #allocation0 [shape = 'u32[]', space=smem, size = 0x4, offset = 0x4, fixed_abs, tag = 'smem constant byte address 0x4 - core index']
  #allocation1 [shape = 'u32[144,128]{1,0:T(1,128)}', space=vmem, size = 0x12000, scoped, tag = 'internal scratch']
  %s0 = inlined_call_operand.vmem [shape: bf16[512,36], index: 0, kind: input, shape index: {}]
  %s1 = inlined_call_operand.vmem [shape: bf16[36,128], index: 1, kind: input, shape index: {}]
  %s2 = inlined_call_operand.hbm [shape: bf16[512,128], index: 2, kind: output, shape index: {0}]
  %s3 = inlined_call_operand.hbm [shape: f32[1,128], index: 3, kind: output, shape index: {1}]
  %s4 = inlined_call_operand.hbm [shape: f32[1,128], index: 4, kind: output, shape index: {2}]
  %5 = xla_tuple %s2, %s3, %s4
  %s6 = sld [smem:[#allocation0]]
  $region38: #{tpu_custom_call.1} parent=0
    _
  %s8 = ssub.s32 1, %s6
  %s9 = scalar_select 0, %s8, %s6
  $region1: #{tpu_custom_call.1} parent=0
    #allocation2 [shape = 'u8[131072]{0}', space=vmem, size = 0x20000, scoped, tag = 'output window, operand 0, single buffered']
    #allocation3 [shape = 's32[1]{0}', space=sflag, size = 0x4, scoped, tag = 'scoped memory for tpu_custom_call.1']
    #allocation4 [shape = 'u8[512]{0}', space=vmem, size = 0x400, scoped, tag = 'output window, operand 1, single buffered']
    #allocation5 [shape = 's32[1]{0}', space=sflag, size = 0x4, scoped, tag = 'scoped memory for tpu_custom_call.1']
    #allocation6 [shape = 'u8[512]{0}', space=vmem, size = 0x400, scoped, tag = 'output window, operand 2, single buffered']
    %10 = vsyncpa [#allocation3], 0
    %11 = vsyncpa [#allocation5], 0
    // Predicated region
    $region2: #{tpu_custom_call.1} parent=1 // pred_check
      _
    $region3: #{tpu_custom_call.1} parent=1 // pred_check_branch
      %13 = sbr.rel (0) target = $region5
    $region4: #{tpu_custom_call.1} parent=1 // pred_region
      _
    $region5: #{tpu_custom_call.1} parent=1 // pred_fallthru
      _
    // Predicated region
    $region6: #{tpu_custom_call.1} parent=1 // pred_check
      _
    $region7: #{tpu_custom_call.1} parent=1 // pred_check_branch
      %15 = sbr.rel (0) target = $region9
    $region8: #{tpu_custom_call.1} parent=1 // pred_region
      _
    $region9: #{tpu_custom_call.1} parent=1 // pred_fallthru
      _
    %p17 = scmp.eq.s32.totalorder 0, 0
    // Predicated region
    $region10: #{tpu_custom_call.1} parent=1 // pred_check
      %p18 = pneg %p17
    $region11: #{tpu_custom_call.1} parent=1 // pred_check_branch
      %20 = sbr.rel (%p18) target = $region13
    $region12: #{tpu_custom_call.1} parent=1 // pred_region
      %21 = vst [vmem:[#allocation4] sm:$0x1] 0.0
      %22 = vst [vmem:[#allocation6] sm:$0x1] 0.0
    $region13: #{tpu_custom_call.1} parent=1 // pred_fallthru
      _
    %v23 = vld [vmem:[%s0] sm:$0xf]
    %v24 = vld [vmem:[%s0 + $0x4] sm:$0xf]
    %v25 = vld [vmem:[%s0 + $0x8] sm:$0xf]
    %v26 = vld [vmem:[%s0 + $0xc] sm:$0xf]
    %v27 = vld [vmem:[%s0 + $0x10] sm:$0xf]
    %v28 = vld [vmem:[%s0 + $0x14] sm:$0xf]
    %v29 = vld [vmem:[%s0 + $0x18] sm:$0xf]
    %v30 = vld [vmem:[%s0 + $0x1c] sm:$0xf]
    %v31 = vld [vmem:[%s0 + $0x20] sm:$0xf]
    %v32 = vld [vmem:[%s0 + $0x24] sm:$0xf]
    %v33 = vld [vmem:[%s0 + $0x28] sm:$0xf]
    %v34 = vld [vmem:[%s0 + $0x2c] sm:$0xf]
    %v35 = vld [vmem:[%s0 + $0x30] sm:$0xf]
    %v36 = vld [vmem:[%s0 + $0x34] sm:$0xf]
    %v37 = vld [vmem:[%s0 + $0x38] sm:$0xf]
    %v38 = vld [vmem:[%s0 + $0x3c] sm:$0xf]
    %v39 = vld [vmem:[%s0 + $0x40] sm:$0xf]
    %v40 = vld [vmem:[%s0 + $0x44] sm:$0xf]
    %v41 = vld [vmem:[%s0 + $0x48] sm:$0xf]
    %v42 = vld [vmem:[%s0 + $0x4c] sm:$0xf]
    %v43 = vld [vmem:[%s0 + $0x50] sm:$0xf]
    %v44 = vld [vmem:[%s0 + $0x54] sm:$0xf]
    %v45 = vld [vmem:[%s0 + $0x58] sm:$0xf]
    %v46 = vld [vmem:[%s0 + $0x5c] sm:$0xf]
    %v47 = vld [vmem:[%s0 + $0x60] sm:$0xf]
    %v48 = vld [vmem:[%s0 + $0x64] sm:$0xf]
    %v49 = vld [vmem:[%s0 + $0x68] sm:$0xf]
    %v50 = vld [vmem:[%s0 + $0x6c] sm:$0xf]
    %v51 = vld [vmem:[%s0 + $0x70] sm:$0xf]
    %v52 = vld [vmem:[%s0 + $0x74] sm:$0xf]
    %v53 = vld [vmem:[%s0 + $0x78] sm:$0xf]
    %v54 = vld [vmem:[%s0 + $0x7c] sm:$0xf]
    %v55 = vld [vmem:[%s0 + $0x80] sm:$0xf]
    %v56 = vld [vmem:[%s0 + $0x84] sm:$0xf]
    %v57 = vld [vmem:[%s0 + $0x88] sm:$0xf]
    %v58 = vld [vmem:[%s0 + $0x8c] sm:$0xf]
    %v59 = vld [vmem:[%s0 + $0x90] sm:$0xf]
    %v60 = vld [vmem:[%s0 + $0x94] sm:$0xf]
    %v61 = vld [vmem:[%s0 + $0x98] sm:$0xf]
    %v62 = vld [vmem:[%s0 + $0x9c] sm:$0xf]
    %v63 = vld [vmem:[%s0 + $0xa0] sm:$0xf]
    %v64 = vld [vmem:[%s0 + $0xa4] sm:$0xf]
    %v65 = vld [vmem:[%s0 + $0xa8] sm:$0xf]
    %v66 = vld [vmem:[%s0 + $0xac] sm:$0xf]
    %v67 = vld [vmem:[%s0 + $0xb0] sm:$0xf]
    %v68 = vld [vmem:[%s0 + $0xb4] sm:$0xf]
    %v69 = vld [vmem:[%s0 + $0xb8] sm:$0xf]
    %v70 = vld [vmem:[%s0 + $0xbc] sm:$0xf]
    %v71 = vld [vmem:[%s0 + $0xc0] sm:$0xf]
    %v72 = vld [vmem:[%s0 + $0xc4] sm:$0xf]
    %v73 = vld [vmem:[%s0 + $0xc8] sm:$0xf]
    %v74 = vld [vmem:[%s0 + $0xcc] sm:$0xf]
    %v75 = vld [vmem:[%s0 + $0xd0] sm:$0xf]
    %v76 = vld [vmem:[%s0 + $0xd4] sm:$0xf]
    %v77 = vld [vmem:[%s0 + $0xd8] sm:$0xf]
    %v78 = vld [vmem:[%s0 + $0xdc] sm:$0xf]
    %v79 = vld [vmem:[%s0 + $0xe0] sm:$0xf]
    %v80 = vld [vmem:[%s0 + $0xe4] sm:$0xf]
    %v81 = vld [vmem:[%s0 + $0xe8] sm:$0xf]
    %v82 = vld [vmem:[%s0 + $0xec] sm:$0xf]
    %v83 = vld [vmem:[%s0 + $0xf0] sm:$0xf]
    %v84 = vld [vmem:[%s0 + $0xf4] sm:$0xf]
    %v85 = vld [vmem:[%s0 + $0xf8] sm:$0xf]
    %v86 = vld [vmem:[%s0 + $0xfc] sm:$0xf]
    %v87 = vld [vmem:[%s1] sm:$0xf]
    %v88 = vld [vmem:[%s1 + $0x4] sm:$0xf]
    %v89 = vld [vmem:[%s1 + $0x8] sm:$0xf]
    %v90 = vld [vmem:[%s1 + $0xc] sm:$0xf]
    %v91 = vld [vmem:[%s1 + $0x10] sm:$0x3]
    %v156 = vunpack.c.l.b16 %v23
    %v157 = vunpack.c.l.b16 %v24
    %v158 = vunpack.c.l.b16 %v25
    %v159 = vunpack.c.l.b16 %v26
    %v160 = vunpack.c.l.b16 %v27
    %v161 = vunpack.c.l.b16 %v28
    %v162 = vunpack.c.l.b16 %v29
    %v163 = vunpack.c.l.b16 %v30
    %v164 = vunpack.c.l.b16 %v31
    %v165 = vunpack.c.l.b16 %v32
    %v166 = vunpack.c.l.b16 %v33
    %v167 = vunpack.c.l.b16 %v34
    %v168 = vunpack.c.l.b16 %v35
    %v169 = vunpack.c.l.b16 %v36
    %v170 = vunpack.c.l.b16 %v37
    %v171 = vunpack.c.l.b16 %v38
    %v172 = vunpack.c.l.b16 %v39
    %v173 = vunpack.c.l.b16 %v40
    %v174 = vunpack.c.l.b16 %v41
    %v175 = vunpack.c.l.b16 %v42
    %v176 = vunpack.c.l.b16 %v43
    %v177 = vunpack.c.l.b16 %v44
    %v178 = vunpack.c.l.b16 %v45
    %v179 = vunpack.c.l.b16 %v46
    %v180 = vunpack.c.l.b16 %v47
    %v181 = vunpack.c.l.b16 %v48
    %v182 = vunpack.c.l.b16 %v49
    %v183 = vunpack.c.l.b16 %v50
    %v184 = vunpack.c.l.b16 %v51
    %v185 = vunpack.c.l.b16 %v52
    %v186 = vunpack.c.l.b16 %v53
    %v187 = vunpack.c.l.b16 %v54
    %v188 = vunpack.c.l.b16 %v55
    %v189 = vunpack.c.l.b16 %v56
    %v190 = vunpack.c.l.b16 %v57
    %v191 = vunpack.c.l.b16 %v58
    %v192 = vunpack.c.l.b16 %v59
    %v193 = vunpack.c.l.b16 %v60
    %v194 = vunpack.c.l.b16 %v61
    %v195 = vunpack.c.l.b16 %v62
    %v196 = vunpack.c.l.b16 %v63
    %v197 = vunpack.c.l.b16 %v64
    %v198 = vunpack.c.l.b16 %v65
    %v199 = vunpack.c.l.b16 %v66
    %v200 = vunpack.c.l.b16 %v67
    %v201 = vunpack.c.l.b16 %v68
    %v202 = vunpack.c.l.b16 %v69
    %v203 = vunpack.c.l.b16 %v70
    %v204 = vunpack.c.l.b16 %v71
    %v205 = vunpack.c.l.b16 %v72
    %v206 = vunpack.c.l.b16 %v73
    %v207 = vunpack.c.l.b16 %v74
    %v208 = vunpack.c.l.b16 %v75
    %v209 = vunpack.c.l.b16 %v76
    %v210 = vunpack.c.l.b16 %v77
    %v211 = vunpack.c.l.b16 %v78
    %v212 = vunpack.c.l.b16 %v79
    %v213 = vunpack.c.l.b16 %v80
    %v214 = vunpack.c.l.b16 %v81
    %v215 = vunpack.c.l.b16 %v82
    %v216 = vunpack.c.l.b16 %v83
    %v217 = vunpack.c.l.b16 %v84
    %v218 = vunpack.c.l.b16 %v85
    %v219 = vunpack.c.l.b16 %v86
    %v220 = vpack.c.b16 %v157, %v156
    %v221 = vpack.c.b16 %v159, %v158
    %v222 = vpack.c.b16 %v161, %v160
    %v223 = vpack.c.b16 %v163, %v162
    %v224 = vpack.c.b16 %v165, %v164
    %v225 = vpack.c.b16 %v167, %v166
    %v226 = vpack.c.b16 %v169, %v168
    %v227 = vpack.c.b16 %v171, %v170
    %v228 = vpack.c.b16 %v173, %v172
    %v229 = vpack.c.b16 %v175, %v174
    %v230 = vpack.c.b16 %v177, %v176
    %v231 = vpack.c.b16 %v179, %v178
    %v232 = vpack.c.b16 %v181, %v180
    %v233 = vpack.c.b16 %v183, %v182
    %v234 = vpack.c.b16 %v185, %v184
    %v235 = vpack.c.b16 %v187, %v186
    %v236 = vpack.c.b16 %v189, %v188
    %v237 = vpack.c.b16 %v191, %v190
    %v238 = vpack.c.b16 %v193, %v192
    %v239 = vpack.c.b16 %v195, %v194
    %v240 = vpack.c.b16 %v197, %v196
    %v241 = vpack.c.b16 %v199, %v198
    %v242 = vpack.c.b16 %v201, %v200
    %v243 = vpack.c.b16 %v203, %v202
    %v244 = vpack.c.b16 %v205, %v204
    %v245 = vpack.c.b16 %v207, %v206
    %v246 = vpack.c.b16 %v209, %v208
    %v247 = vpack.c.b16 %v211, %v210
    %v248 = vpack.c.b16 %v213, %v212
    %v249 = vpack.c.b16 %v215, %v214
    %v250 = vpack.c.b16 %v217, %v216
    %v251 = vpack.c.b16 %v219, %v218
    %v257 = vunpack.c.l.b16 %v87
    %v258 = vunpack.c.l.b16 %v88
    %v259 = vunpack.c.l.b16 %v89
    %v260 = vunpack.c.l.b16 %v90
    %v261 = vunpack.c.l.b16 %v91
    %v262 = vpack.c.b16 %v258, %v257
    %v263 = vpack.c.b16 %v260, %v259
    %v264 = vpack.c.b16 %v261, %v261
    %vm267 = vcmask 293888
    %v269 = vsel %vm267, %v220, 0
    %v272 = vsel %vm267, %v221, 0
    %v275 = vsel %vm267, %v222, 0
    %v278 = vsel %vm267, %v223, 0
    %v281 = vsel %vm267, %v224, 0
    %v284 = vsel %vm267, %v225, 0
    %v287 = vsel %vm267, %v226, 0
    %v290 = vsel %vm267, %v227, 0
    %v293 = vsel %vm267, %v228, 0
    %v296 = vsel %vm267, %v229, 0
    %v299 = vsel %vm267, %v230, 0
    %v302 = vsel %vm267, %v231, 0
    %v305 = vsel %vm267, %v232, 0
    %v308 = vsel %vm267, %v233, 0
    %v311 = vsel %vm267, %v234, 0
    %v314 = vsel %vm267, %v235, 0
    %v317 = vsel %vm267, %v236, 0
    %v320 = vsel %vm267, %v237, 0
    %v323 = vsel %vm267, %v238, 0
    %v326 = vsel %vm267, %v239, 0
    %v329 = vsel %vm267, %v240, 0
    %v332 = vsel %vm267, %v241, 0
    %v335 = vsel %vm267, %v242, 0
    %v338 = vsel %vm267, %v243, 0
    %v341 = vsel %vm267, %v244, 0
    %v344 = vsel %vm267, %v245, 0
    %v347 = vsel %vm267, %v246, 0
    %v350 = vsel %vm267, %v247, 0
    %v353 = vsel %vm267, %v248, 0
    %v356 = vsel %vm267, %v249, 0
    %v359 = vsel %vm267, %v250, 0
    %v362 = vsel %vm267, %v251, 0
    %vm364 = vcmask 1041408
    %v366 = vsel %vm364, %v264, 0
    %368 = vmatprep.subr.bf16.mxu0 0
    %369 = vmatpush1.bf16.msra.mxu0 0
    %370 = vmatprep.subr.bf16.mxu0 0
    %371 = vmatpush1.bf16.msra.mxu0 0
    %372 = vmatprep.subr.bf16.mxu0 0
    %373 = vmatpush1.bf16.msra.mxu0 0
    %374 = vmatprep.subr.bf16.mxu0 0
    %375 = vmatpush1.bf16.msra.mxu0 0
    %376 = vmatprep.subr.bf16.mxu0 0
    %377 = vmatpush1.bf16.msra.mxu0 0
    %378 = vmatprep.subr.bf16.mxu0 0
    %379 = vmatpush1.bf16.msra.mxu0 %v366
    %380 = vmatprep.subr.bf16.mxu0 0
    %381 = vmatpush1.bf16.msra.mxu0 %v263
    %382 = vmatprep.subr.bf16.mxu0 0
    %383 = vmatpush1.bf16.msra.mxu0 %v262
    %384 = vmatprep.subr.bf16.mxu0 0
    %385 = vmatpush2.bf16.msra.mxu0 0
    %386 = vmatprep.subr.bf16.mxu0 0
    %387 = vmatpush2.bf16.msra.mxu0 0
    %388 = vmatprep.subr.bf16.mxu0 0
    %389 = vmatpush2.bf16.msra.mxu0 0
    %390 = vmatprep.subr.bf16.mxu0 0
    %391 = vmatpush2.bf16.msra.mxu0 0
    %392 = vmatprep.subr.bf16.mxu0 0
    %393 = vmatpush2.bf16.msra.mxu0 0
    %394 = vmatprep.subr.bf16.mxu0 0
    %395 = vmatpush2.bf16.msra.mxu0 0
    %396 = vmatprep.subr.bf16.mxu0 0
    %397 = vmatpush2.bf16.msra.mxu0 0
    %398 = vmatprep.subr.bf16.mxu0 0
    %399 = vmatpush2.bf16.msra.mxu0 0
    %400 = vmatprep.mubr.bf16.mxu0 0
    %401 = vmatmul.mubr.bf16.gmra.mxu0 %v269
    %v402 = vpop.f32.mrf.mxu0
    %v403 = vadd.f32 0.0, %v402
    %v404 = vpop.f32.mrf.mxu0
    %v405 = vpop.f32.mrf.mxu0
    %v406 = vadd.f32 0.0, %v405
    %v407 = vpop.f32.mrf.mxu0
    %408 = vmatprep.mubr.bf16.mxu0 0
    %409 = vmatmul.mubr.bf16.gmra.mxu0 %v272
    %v410 = vpop.f32.mrf.mxu0
    %v411 = vadd.f32 0.0, %v410
    %v412 = vpop.f32.mrf.mxu0
    %v413 = vpop.f32.mrf.mxu0
    %v414 = vadd.f32 0.0, %v413
    %v415 = vpop.f32.mrf.mxu0
    %416 = vmatprep.mubr.bf16.mxu0 0
    %417 = vmatmul.mubr.bf16.gmra.mxu0 %v275
    %v418 = vpop.f32.mrf.mxu0
    %v419 = vadd.f32 0.0, %v418
    %v420 = vpop.f32.mrf.mxu0
    %v421 = vpop.f32.mrf.mxu0
    %v422 = vadd.f32 0.0, %v421
    %v423 = vpop.f32.mrf.mxu0
    %424 = vmatprep.mubr.bf16.mxu0 0
    %425 = vmatmul.mubr.bf16.gmra.mxu0 %v278
    %v426 = vpop.f32.mrf.mxu0
    %v427 = vadd.f32 0.0, %v426
    %v428 = vpop.f32.mrf.mxu0
    %v429 = vpop.f32.mrf.mxu0
    %v430 = vadd.f32 0.0, %v429
    %v431 = vpop.f32.mrf.mxu0
    %432 = vmatprep.mubr.bf16.mxu0 0
    %433 = vmatmul.mubr.bf16.gmra.mxu0 %v281
    %v434 = vpop.f32.mrf.mxu0
    %v435 = vadd.f32 0.0, %v434
    %v436 = vpop.f32.mrf.mxu0
    %v437 = vpop.f32.mrf.mxu0
    %v438 = vadd.f32 0.0, %v437
    %v439 = vpop.f32.mrf.mxu0
    %440 = vmatprep.mubr.bf16.mxu0 0
    %441 = vmatmul.mubr.bf16.gmra.mxu0 %v284
    %v442 = vpop.f32.mrf.mxu0
    %v443 = vadd.f32 0.0, %v442
    %v444 = vpop.f32.mrf.mxu0
    %v445 = vpop.f32.mrf.mxu0
    %v446 = vadd.f32 0.0, %v445
    %v447 = vpop.f32.mrf.mxu0
    %448 = vmatprep.mubr.bf16.mxu0 0
    %449 = vmatmul.mubr.bf16.gmra.mxu0 %v287
    %v450 = vpop.f32.mrf.mxu0
    %v451 = vadd.f32 0.0, %v450
    %v452 = vpop.f32.mrf.mxu0
    %v453 = vpop.f32.mrf.mxu0
    %v454 = vadd.f32 0.0, %v453
    %v455 = vpop.f32.mrf.mxu0
    %456 = vmatprep.mubr.bf16.mxu0 0
    %457 = vmatmul.mubr.bf16.gmra.mxu0 %v290
    %v458 = vpop.f32.mrf.mxu0
    %v459 = vadd.f32 0.0, %v458
    %v460 = vpop.f32.mrf.mxu0
    %v461 = vpop.f32.mrf.mxu0
    %v462 = vadd.f32 0.0, %v461
    %v463 = vpop.f32.mrf.mxu0
    %464 = vmatprep.mubr.bf16.mxu0 0
    %465 = vmatmul.mubr.bf16.gmra.mxu0 %v293
    %v466 = vpop.f32.mrf.mxu0
    %v467 = vadd.f32 0.0, %v466
    %v468 = vpop.f32.mrf.mxu0
    %v469 = vpop.f32.mrf.mxu0
    %v470 = vadd.f32 0.0, %v469
    %v471 = vpop.f32.mrf.mxu0
    %472 = vmatprep.mubr.bf16.mxu0 0
    %473 = vmatmul.mubr.bf16.gmra.mxu0 %v296
    %v474 = vpop.f32.mrf.mxu0
    %v475 = vadd.f32 0.0, %v474
    %v476 = vpop.f32.mrf.mxu0
    %v477 = vpop.f32.mrf.mxu0
    %v478 = vadd.f32 0.0, %v477
    %v479 = vpop.f32.mrf.mxu0
    %480 = vmatprep.mubr.bf16.mxu0 0
    %481 = vmatmul.mubr.bf16.gmra.mxu0 %v299
    %v482 = vpop.f32.mrf.mxu0
    %v483 = vadd.f32 0.0, %v482
    %v484 = vpop.f32.mrf.mxu0
    %v485 = vpop.f32.mrf.mxu0
    %v486 = vadd.f32 0.0, %v485
    %v487 = vpop.f32.mrf.mxu0
    %488 = vmatprep.mubr.bf16.mxu0 0
    %489 = vmatmul.mubr.bf16.gmra.mxu0 %v302
    %v490 = vpop.f32.mrf.mxu0
    %v491 = vadd.f32 0.0, %v490
    %v492 = vpop.f32.mrf.mxu0
    %v493 = vpop.f32.mrf.mxu0
    %v494 = vadd.f32 0.0, %v493
    %v495 = vpop.f32.mrf.mxu0
    %496 = vmatprep.mubr.bf16.mxu0 0
    %497 = vmatmul.mubr.bf16.gmra.mxu0 %v305
    %v498 = vpop.f32.mrf.mxu0
    %v499 = vadd.f32 0.0, %v498
    %v500 = vpop.f32.mrf.mxu0
    %v501 = vpop.f32.mrf.mxu0
    %v502 = vadd.f32 0.0, %v501
    %v503 = vpop.f32.mrf.mxu0
    %504 = vmatprep.mubr.bf16.mxu0 0
    %505 = vmatmul.mubr.bf16.gmra.mxu0 %v308
    %v506 = vpop.f32.mrf.mxu0
    %v507 = vadd.f32 0.0, %v506
    %v508 = vpop.f32.mrf.mxu0
    %v509 = vpop.f32.mrf.mxu0
    %v510 = vadd.f32 0.0, %v509
    %v511 = vpop.f32.mrf.mxu0
    %512 = vmatprep.mubr.bf16.mxu0 0
    %513 = vmatmul.mubr.bf16.gmra.mxu0 %v311
    %v514 = vpop.f32.mrf.mxu0
    %v515 = vadd.f32 0.0, %v514
    %v516 = vpop.f32.mrf.mxu0
    %v517 = vpop.f32.mrf.mxu0
    %v518 = vadd.f32 0.0, %v517
    %v519 = vpop.f32.mrf.mxu0
    %520 = vmatprep.mubr.bf16.mxu0 0
    %521 = vmatmul.mubr.bf16.gmra.mxu0 %v314
    %v522 = vpop.f32.mrf.mxu0
    %v523 = vadd.f32 0.0, %v522
    %v524 = vpop.f32.mrf.mxu0
    %v525 = vpop.f32.mrf.mxu0
    %v526 = vadd.f32 0.0, %v525
    %v527 = vpop.f32.mrf.mxu0
    %528 = vmatprep.mubr.bf16.mxu0 0
    %529 = vmatmul.mubr.bf16.gmra.mxu0 %v317
    %v530 = vpop.f32.mrf.mxu0
    %v531 = vadd.f32 0.0, %v530
    %v532 = vpop.f32.mrf.mxu0
    %v533 = vpop.f32.mrf.mxu0
    %v534 = vadd.f32 0.0, %v533
    %v535 = vpop.f32.mrf.mxu0
    %536 = vmatprep.mubr.bf16.mxu0 0
    %537 = vmatmul.mubr.bf16.gmra.mxu0 %v320
    %v538 = vpop.f32.mrf.mxu0
    %v539 = vadd.f32 0.0, %v538
    %v540 = vpop.f32.mrf.mxu0
    %v541 = vpop.f32.mrf.mxu0
    %v542 = vadd.f32 0.0, %v541
    %v543 = vpop.f32.mrf.mxu0
    %544 = vmatprep.mubr.bf16.mxu0 0
    %545 = vmatmul.mubr.bf16.gmra.mxu0 %v323
    %v546 = vpop.f32.mrf.mxu0
    %v547 = vadd.f32 0.0, %v546
    %v548 = vpop.f32.mrf.mxu0
    %v549 = vpop.f32.mrf.mxu0
    %v550 = vadd.f32 0.0, %v549
    %v551 = vpop.f32.mrf.mxu0
    %552 = vmatprep.mubr.bf16.mxu0 0
    %553 = vmatmul.mubr.bf16.gmra.mxu0 %v326
    %v554 = vpop.f32.mrf.mxu0
    %v555 = vadd.f32 0.0, %v554
    %v556 = vpop.f32.mrf.mxu0
    %v557 = vpop.f32.mrf.mxu0
    %v558 = vadd.f32 0.0, %v557
    %v559 = vpop.f32.mrf.mxu0
    %560 = vmatprep.mubr.bf16.mxu0 0
    %561 = vmatmul.mubr.bf16.gmra.mxu0 %v329
    %v562 = vpop.f32.mrf.mxu0
    %v563 = vadd.f32 0.0, %v562
    %v564 = vpop.f32.mrf.mxu0
    %v565 = vpop.f32.mrf.mxu0
    %v566 = vadd.f32 0.0, %v565
    %v567 = vpop.f32.mrf.mxu0
    %568 = vmatprep.mubr.bf16.mxu0 0
    %569 = vmatmul.mubr.bf16.gmra.mxu0 %v332
    %v570 = vpop.f32.mrf.mxu0
    %v571 = vadd.f32 0.0, %v570
    %v572 = vpop.f32.mrf.mxu0
    %v573 = vpop.f32.mrf.mxu0
    %v574 = vadd.f32 0.0, %v573
    %v575 = vpop.f32.mrf.mxu0
    %576 = vmatprep.mubr.bf16.mxu0 0
    %577 = vmatmul.mubr.bf16.gmra.mxu0 %v335
    %v578 = vpop.f32.mrf.mxu0
    %v579 = vadd.f32 0.0, %v578
    %v580 = vpop.f32.mrf.mxu0
    %v581 = vpop.f32.mrf.mxu0
    %v582 = vadd.f32 0.0, %v581
    %v583 = vpop.f32.mrf.mxu0
    %584 = vmatprep.mubr.bf16.mxu0 0
    %585 = vmatmul.mubr.bf16.gmra.mxu0 %v338
    %v586 = vpop.f32.mrf.mxu0
    %v587 = vadd.f32 0.0, %v586
    %v588 = vpop.f32.mrf.mxu0
    %v589 = vpop.f32.mrf.mxu0
    %v590 = vadd.f32 0.0, %v589
    %v591 = vpop.f32.mrf.mxu0
    %592 = vmatprep.mubr.bf16.mxu0 0
    %593 = vmatmul.mubr.bf16.gmra.mxu0 %v341
    %v594 = vpop.f32.mrf.mxu0
    %v595 = vadd.f32 0.0, %v594
    %v596 = vpop.f32.mrf.mxu0
    %v597 = vpop.f32.mrf.mxu0
    %v598 = vadd.f32 0.0, %v597
    %v599 = vpop.f32.mrf.mxu0
    %600 = vmatprep.mubr.bf16.mxu0 0
    %601 = vmatmul.mubr.bf16.gmra.mxu0 %v344
    %v602 = vpop.f32.mrf.mxu0
    %v603 = vadd.f32 0.0, %v602
    %v604 = vpop.f32.mrf.mxu0
    %v605 = vpop.f32.mrf.mxu0
    %v606 = vadd.f32 0.0, %v605
    %v607 = vpop.f32.mrf.mxu0
    %608 = vmatprep.mubr.bf16.mxu0 0
    %609 = vmatmul.mubr.bf16.gmra.mxu0 %v347
    %v610 = vpop.f32.mrf.mxu0
    %v611 = vadd.f32 0.0, %v610
    %v612 = vpop.f32.mrf.mxu0
    %v613 = vpop.f32.mrf.mxu0
    %v614 = vadd.f32 0.0, %v613
    %v615 = vpop.f32.mrf.mxu0
    %616 = vmatprep.mubr.bf16.mxu0 0
    %617 = vmatmul.mubr.bf16.gmra.mxu0 %v350
    %v618 = vpop.f32.mrf.mxu0
    %v619 = vadd.f32 0.0, %v618
    %v620 = vpop.f32.mrf.mxu0
    %v621 = vpop.f32.mrf.mxu0
    %v622 = vadd.f32 0.0, %v621
    %v623 = vpop.f32.mrf.mxu0
    %624 = vmatprep.mubr.bf16.mxu0 0
    %625 = vmatmul.mubr.bf16.gmra.mxu0 %v353
    %v626 = vpop.f32.mrf.mxu0
    %v627 = vadd.f32 0.0, %v626
    %v628 = vpop.f32.mrf.mxu0
    %v629 = vpop.f32.mrf.mxu0
    %v630 = vadd.f32 0.0, %v629
    %v631 = vpop.f32.mrf.mxu0
    %632 = vmatprep.mubr.bf16.mxu0 0
    %633 = vmatmul.mubr.bf16.gmra.mxu0 %v356
    %v634 = vpop.f32.mrf.mxu0
    %v635 = vadd.f32 0.0, %v634
    %v636 = vpop.f32.mrf.mxu0
    %v637 = vpop.f32.mrf.mxu0
    %v638 = vadd.f32 0.0, %v637
    %v639 = vpop.f32.mrf.mxu0
    %640 = vmatprep.mubr.bf16.mxu0 0
    %641 = vmatmul.mubr.bf16.gmra.mxu0 %v359
    %v642 = vpop.f32.mrf.mxu0
    %v643 = vadd.f32 0.0, %v642
    %v644 = vpop.f32.mrf.mxu0
    %v645 = vpop.f32.mrf.mxu0
    %v646 = vadd.f32 0.0, %v645
    %v647 = vpop.f32.mrf.mxu0
    %648 = vmatprep.mubr.bf16.mxu0 0
    %649 = vmatmul.mubr.bf16.gmra.mxu0 %v362
    %v650 = vpop.f32.mrf.mxu0
    %v651 = vadd.f32 0.0, %v650
    %v652 = vpop.f32.mrf.mxu0
    %v653 = vpop.f32.mrf.mxu0
    %v654 = vadd.f32 0.0, %v653
    %v655 = vpop.f32.mrf.mxu0
    %656 = vdwg.mxu0
    %v657 = vpack.c.bf16 %v406, %v403
    %v658 = vpack.c.bf16 %v414, %v411
    %v659 = vpack.c.bf16 %v422, %v419
    %v660 = vpack.c.bf16 %v430, %v427
    %v661 = vpack.c.bf16 %v438, %v435
    %v662 = vpack.c.bf16 %v446, %v443
    %v663 = vpack.c.bf16 %v454, %v451
    %v664 = vpack.c.bf16 %v462, %v459
    %v665 = vpack.c.bf16 %v470, %v467
    %v666 = vpack.c.bf16 %v478, %v475
    %v667 = vpack.c.bf16 %v486, %v483
    %v668 = vpack.c.bf16 %v494, %v491
    %v669 = vpack.c.bf16 %v502, %v499
    %v670 = vpack.c.bf16 %v510, %v507
    %v671 = vpack.c.bf16 %v518, %v515
    %v672 = vpack.c.bf16 %v526, %v523
    %v673 = vpack.c.bf16 %v534, %v531
    %v674 = vpack.c.bf16 %v542, %v539
    %v675 = vpack.c.bf16 %v550, %v547
    %v676 = vpack.c.bf16 %v558, %v555
    %v677 = vpack.c.bf16 %v566, %v563
    %v678 = vpack.c.bf16 %v574, %v571
    %v679 = vpack.c.bf16 %v582, %v579
    %v680 = vpack.c.bf16 %v590, %v587
    %v681 = vpack.c.bf16 %v598, %v595
    %v682 = vpack.c.bf16 %v606, %v603
    %v683 = vpack.c.bf16 %v614, %v611
    %v684 = vpack.c.bf16 %v622, %v619
    %v685 = vpack.c.bf16 %v630, %v627
    %v686 = vpack.c.bf16 %v638, %v635
    %v687 = vpack.c.bf16 %v646, %v643
    %v688 = vpack.c.bf16 %v654, %v651
    %v721 = vunpack.c.l.b16 %v657
    %v722 = vunpack.c.h.b16 %v657
    %v723 = vunpack.c.l.b16 %v658
    %v724 = vunpack.c.h.b16 %v658
    %v725 = vunpack.c.l.b16 %v659
    %v726 = vunpack.c.h.b16 %v659
    %v727 = vunpack.c.l.b16 %v660
    %v728 = vunpack.c.h.b16 %v660
    %v729 = vunpack.c.l.b16 %v661
    %v730 = vunpack.c.h.b16 %v661
    %v731 = vunpack.c.l.b16 %v662
    %v732 = vunpack.c.h.b16 %v662
    %v733 = vunpack.c.l.b16 %v663
    %v734 = vunpack.c.h.b16 %v663
    %v735 = vunpack.c.l.b16 %v664
    %v736 = vunpack.c.h.b16 %v664
    %v737 = vunpack.c.l.b16 %v665
    %v738 = vunpack.c.h.b16 %v665
    %v739 = vunpack.c.l.b16 %v666
    %v740 = vunpack.c.h.b16 %v666
    %v741 = vunpack.c.l.b16 %v667
    %v742 = vunpack.c.h.b16 %v667
    %v743 = vunpack.c.l.b16 %v668
    %v744 = vunpack.c.h.b16 %v668
    %v745 = vunpack.c.l.b16 %v669
    %v746 = vunpack.c.h.b16 %v669
    %v747 = vunpack.c.l.b16 %v670
    %v748 = vunpack.c.h.b16 %v670
    %v749 = vunpack.c.l.b16 %v671
    %v750 = vunpack.c.h.b16 %v671
    %v751 = vunpack.c.l.b16 %v672
    %v752 = vunpack.c.h.b16 %v672
    %v753 = vunpack.c.l.b16 %v673
    %v754 = vunpack.c.h.b16 %v673
    %v755 = vunpack.c.l.b16 %v674
    %v756 = vunpack.c.h.b16 %v674
    %v757 = vunpack.c.l.b16 %v675
    %v758 = vunpack.c.h.b16 %v675
    %v759 = vunpack.c.l.b16 %v676
    %v760 = vunpack.c.h.b16 %v676
    %v761 = vunpack.c.l.b16 %v677
    %v762 = vunpack.c.h.b16 %v677
    %v763 = vunpack.c.l.b16 %v678
    %v764 = vunpack.c.h.b16 %v678
    %v765 = vunpack.c.l.b16 %v679
    %v766 = vunpack.c.h.b16 %v679
    %v767 = vunpack.c.l.b16 %v680
    %v768 = vunpack.c.h.b16 %v680
    %v769 = vunpack.c.l.b16 %v681
    %v770 = vunpack.c.h.b16 %v681
    %v771 = vunpack.c.l.b16 %v682
    %v772 = vunpack.c.h.b16 %v682
    %v773 = vunpack.c.l.b16 %v683
    %v774 = vunpack.c.h.b16 %v683
    %v775 = vunpack.c.l.b16 %v684
    %v776 = vunpack.c.h.b16 %v684
    %v777 = vunpack.c.l.b16 %v685
    %v778 = vunpack.c.h.b16 %v685
    %v779 = vunpack.c.l.b16 %v686
    %v780 = vunpack.c.h.b16 %v686
    %v781 = vunpack.c.l.b16 %v687
    %v782 = vunpack.c.h.b16 %v687
    %v783 = vunpack.c.l.b16 %v688
    %v784 = vunpack.c.h.b16 %v688
    %v785 = vpack.c.b16 %v721, %v721
    %v786 = vpack.c.b16 %v722, %v722
    %v787 = vpack.c.b16 %v723, %v723
    %v788 = vpack.c.b16 %v724, %v724
    %v789 = vpack.c.b16 %v725, %v725
    %v790 = vpack.c.b16 %v726, %v726
    %v791 = vpack.c.b16 %v727, %v727
    %v792 = vpack.c.b16 %v728, %v728
    %v793 = vpack.c.b16 %v729, %v729
    %v794 = vpack.c.b16 %v730, %v730
    %v795 = vpack.c.b16 %v731, %v731
    %v796 = vpack.c.b16 %v732, %v732
    %v797 = vpack.c.b16 %v733, %v733
    %v798 = vpack.c.b16 %v734, %v734
    %v799 = vpack.c.b16 %v735, %v735
    %v800 = vpack.c.b16 %v736, %v736
    %v801 = vpack.c.b16 %v737, %v737
    %v802 = vpack.c.b16 %v738, %v738
    %v803 = vpack.c.b16 %v739, %v739
    %v804 = vpack.c.b16 %v740, %v740
    %v805 = vpack.c.b16 %v741, %v741
    %v806 = vpack.c.b16 %v742, %v742
    %v807 = vpack.c.b16 %v743, %v743
    %v808 = vpack.c.b16 %v744, %v744
    %v809 = vpack.c.b16 %v745, %v745
    %v810 = vpack.c.b16 %v746, %v746
    %v811 = vpack.c.b16 %v747, %v747
    %v812 = vpack.c.b16 %v748, %v748
    %v813 = vpack.c.b16 %v749, %v749
    %v814 = vpack.c.b16 %v750, %v750
    %v815 = vpack.c.b16 %v751, %v751
    %v816 = vpack.c.b16 %v752, %v752
    %v817 = vpack.c.b16 %v753, %v753
    %v818 = vpack.c.b16 %v754, %v754
    %v819 = vpack.c.b16 %v755, %v755
    %v820 = vpack.c.b16 %v756, %v756
    %v821 = vpack.c.b16 %v757, %v757
    %v822 = vpack.c.b16 %v758, %v758
    %v823 = vpack.c.b16 %v759, %v759
    %v824 = vpack.c.b16 %v760, %v760
    %v825 = vpack.c.b16 %v761, %v761
    %v826 = vpack.c.b16 %v762, %v762
    %v827 = vpack.c.b16 %v763, %v763
    %v828 = vpack.c.b16 %v764, %v764
    %v829 = vpack.c.b16 %v765, %v765
    %v830 = vpack.c.b16 %v766, %v766
    %v831 = vpack.c.b16 %v767, %v767
    %v832 = vpack.c.b16 %v768, %v768
    %v833 = vpack.c.b16 %v769, %v769
    %v834 = vpack.c.b16 %v770, %v770
    %v835 = vpack.c.b16 %v771, %v771
    %v836 = vpack.c.b16 %v772, %v772
    %v837 = vpack.c.b16 %v773, %v773
    %v838 = vpack.c.b16 %v774, %v774
    %v839 = vpack.c.b16 %v775, %v775
    %v840 = vpack.c.b16 %v776, %v776
    %v841 = vpack.c.b16 %v777, %v777
    %v842 = vpack.c.b16 %v778, %v778
    %v843 = vpack.c.b16 %v779, %v779
    %v844 = vpack.c.b16 %v780, %v780
    %v845 = vpack.c.b16 %v781, %v781
    %v846 = vpack.c.b16 %v782, %v782
    %v847 = vpack.c.b16 %v783, %v783
    %v848 = vpack.c.b16 %v784, %v784
    %913 = vst [vmem:[#allocation2] sm:$0xf] %v785
    %914 = vst [vmem:[#allocation2 + $0x4] sm:$0xf] %v786
    %915 = vst [vmem:[#allocation2 + $0x8] sm:$0xf] %v787
    %916 = vst [vmem:[#allocation2 + $0xc] sm:$0xf] %v788
    %917 = vst [vmem:[#allocation2 + $0x10] sm:$0xf] %v789
    %918 = vst [vmem:[#allocation2 + $0x14] sm:$0xf] %v790
    %919 = vst [vmem:[#allocation2 + $0x18] sm:$0xf] %v791
    %920 = vst [vmem:[#allocation2 + $0x1c] sm:$0xf] %v792
    %921 = vst [vmem:[#allocation2 + $0x20] sm:$0xf] %v793
    %922 = vst [vmem:[#allocation2 + $0x24] sm:$0xf] %v794
    %923 = vst [vmem:[#allocation2 + $0x28] sm:$0xf] %v795
    %924 = vst [vmem:[#allocation2 + $0x2c] sm:$0xf] %v796
    %925 = vst [vmem:[#allocation2 + $0x30] sm:$0xf] %v797
    %926 = vst [vmem:[#allocation2 + $0x34] sm:$0xf] %v798
    %927 = vst [vmem:[#allocation2 + $0x38] sm:$0xf] %v799
    %928 = vst [vmem:[#allocation2 + $0x3c] sm:$0xf] %v800
    %929 = vst [vmem:[#allocation2 + $0x40] sm:$0xf] %v801
    %930 = vst [vmem:[#allocation2 + $0x44] sm:$0xf] %v802
    %931 = vst [vmem:[#allocation2 + $0x48] sm:$0xf] %v803
    %932 = vst [vmem:[#allocation2 + $0x4c] sm:$0xf] %v804
    %933 = vst [vmem:[#allocation2 + $0x50] sm:$0xf] %v805
    %934 = vst [vmem:[#allocation2 + $0x54] sm:$0xf] %v806
    %935 = vst [vmem:[#allocation2 + $0x58] sm:$0xf] %v807
    %936 = vst [vmem:[#allocation2 + $0x5c] sm:$0xf] %v808
    %937 = vst [vmem:[#allocation2 + $0x60] sm:$0xf] %v809
    %938 = vst [vmem:[#allocation2 + $0x64] sm:$0xf] %v810
    %939 = vst [vmem:[#allocation2 + $0x68] sm:$0xf] %v811
    %940 = vst [vmem:[#allocation2 + $0x6c] sm:$0xf] %v812
    %941 = vst [vmem:[#allocation2 + $0x70] sm:$0xf] %v813
    %942 = vst [vmem:[#allocation2 + $0x74] sm:$0xf] %v814
    %943 = vst [vmem:[#allocation2 + $0x78] sm:$0xf] %v815
    %944 = vst [vmem:[#allocation2 + $0x7c] sm:$0xf] %v816
    %945 = vst [vmem:[#allocation2 + $0x80] sm:$0xf] %v817
    %946 = vst [vmem:[#allocation2 + $0x84] sm:$0xf] %v818
    %947 = vst [vmem:[#allocation2 + $0x88] sm:$0xf] %v819
    %948 = vst [vmem:[#allocation2 + $0x8c] sm:$0xf] %v820
    %949 = vst [vmem:[#allocation2 + $0x90] sm:$0xf] %v821
    %950 = vst [vmem:[#allocation2 + $0x94] sm:$0xf] %v822
    %951 = vst [vmem:[#allocation2 + $0x98] sm:$0xf] %v823
    %952 = vst [vmem:[#allocation2 + $0x9c] sm:$0xf] %v824
    %953 = vst [vmem:[#allocation2 + $0xa0] sm:$0xf] %v825
    %954 = vst [vmem:[#allocation2 + $0xa4] sm:$0xf] %v826
    %955 = vst [vmem:[#allocation2 + $0xa8] sm:$0xf] %v827
    %956 = vst [vmem:[#allocation2 + $0xac] sm:$0xf] %v828
    %957 = vst [vmem:[#allocation2 + $0xb0] sm:$0xf] %v829
    %958 = vst [vmem:[#allocation2 + $0xb4] sm:$0xf] %v830
    %959 = vst [vmem:[#allocation2 + $0xb8] sm:$0xf] %v831
    %960 = vst [vmem:[#allocation2 + $0xbc] sm:$0xf] %v832
    %961 = vst [vmem:[#allocation2 + $0xc0] sm:$0xf] %v833
    %962 = vst [vmem:[#allocation2 + $0xc4] sm:$0xf] %v834
    %963 = vst [vmem:[#allocation2 + $0xc8] sm:$0xf] %v835
    %964 = vst [vmem:[#allocation2 + $0xcc] sm:$0xf] %v836
    %965 = vst [vmem:[#allocation2 + $0xd0] sm:$0xf] %v837
    %966 = vst [vmem:[#allocation2 + $0xd4] sm:$0xf] %v838
    %967 = vst [vmem:[#allocation2 + $0xd8] sm:$0xf] %v839
    %968 = vst [vmem:[#allocation2 + $0xdc] sm:$0xf] %v840
    %969 = vst [vmem:[#allocation2 + $0xe0] sm:$0xf] %v841
    %970 = vst [vmem:[#allocation2 + $0xe4] sm:$0xf] %v842
    %971 = vst [vmem:[#allocation2 + $0xe8] sm:$0xf] %v843
    %972 = vst [vmem:[#allocation2 + $0xec] sm:$0xf] %v844
    %973 = vst [vmem:[#allocation2 + $0xf0] sm:$0xf] %v845
    %974 = vst [vmem:[#allocation2 + $0xf4] sm:$0xf] %v846
    %975 = vst [vmem:[#allocation2 + $0xf8] sm:$0xf] %v847
    %976 = vst [vmem:[#allocation2 + $0xfc] sm:$0xf] %v848
    %v977 = vld [vmem:[#allocation4] sm:$0x1]
    %v978 = vadd.f32 %v403, %v406
    %v979 = vadd.f32 %v978, %v411
    %v980 = vadd.f32 %v979, %v414
    %v981 = vadd.f32 %v980, %v419
    %v982 = vadd.f32 %v981, %v422
    %v983 = vadd.f32 %v982, %v427
    %v984 = vadd.f32 %v983, %v430
    %v985 = vadd.f32 %v984, %v435
    %v986 = vadd.f32 %v985, %v438
    %v987 = vadd.f32 %v986, %v443
    %v988 = vadd.f32 %v987, %v446
    %v989 = vadd.f32 %v988, %v451
    %v990 = vadd.f32 %v989, %v454
    %v991 = vadd.f32 %v990, %v459
    %v992 = vadd.f32 %v991, %v462
    %v993 = vadd.f32 %v992, %v467
    %v994 = vadd.f32 %v993, %v470
    %v995 = vadd.f32 %v994, %v475
    %v996 = vadd.f32 %v995, %v478
    %v997 = vadd.f32 %v996, %v483
    %v998 = vadd.f32 %v997, %v486
    %v999 = vadd.f32 %v998, %v491
    %v1000 = vadd.f32 %v999, %v494
    %v1001 = vadd.f32 %v1000, %v499
    %v1002 = vadd.f32 %v1001, %v502
    %v1003 = vadd.f32 %v1002, %v507
    %v1004 = vadd.f32 %v1003, %v510
    %v1005 = vadd.f32 %v1004, %v515
    %v1006 = vadd.f32 %v1005, %v518
    %v1007 = vadd.f32 %v1006, %v523
    %v1008 = vadd.f32 %v1007, %v526
    %v1009 = vadd.f32 %v1008, %v531
    %v1010 = vadd.f32 %v1009, %v534
    %v1011 = vadd.f32 %v1010, %v539
    %v1012 = vadd.f32 %v1011, %v542
    %v1013 = vadd.f32 %v1012, %v547
    %v1014 = vadd.f32 %v1013, %v550
    %v1015 = vadd.f32 %v1014, %v555
    %v1016 = vadd.f32 %v1015, %v558
    %v1017 = vadd.f32 %v1016, %v563
    %v1018 = vadd.f32 %v1017, %v566
    %v1019 = vadd.f32 %v1018, %v571
    %v1020 = vadd.f32 %v1019, %v574
    %v1021 = vadd.f32 %v1020, %v579
    %v1022 = vadd.f32 %v1021, %v582
    %v1023 = vadd.f32 %v1022, %v587
    %v1024 = vadd.f32 %v1023, %v590
    %v1025 = vadd.f32 %v1024, %v595
    %v1026 = vadd.f32 %v1025, %v598
    %v1027 = vadd.f32 %v1026, %v603
    %v1028 = vadd.f32 %v1027, %v606
    %v1029 = vadd.f32 %v1028, %v611
    %v1030 = vadd.f32 %v1029, %v614
    %v1031 = vadd.f32 %v1030, %v619
    %v1032 = vadd.f32 %v1031, %v622
    %v1033 = vadd.f32 %v1032, %v627
    %v1034 = vadd.f32 %v1033, %v630
    %v1035 = vadd.f32 %v1034, %v635
    %v1036 = vadd.f32 %v1035, %v638
    %v1037 = vadd.f32 %v1036, %v643
    %v1038 = vadd.f32 %v1037, %v646
    %v1039 = vadd.f32 %v1038, %v651
    %v1040 = vadd.f32 %v1039, %v654
    %v1041 = vrot.slane %v1040, 4
    %v1042 = vadd.f32 %v1040, %v1041
    %v1043 = vrot.slane %v1042, 2
    %v1044 = vadd.f32 %v1042, %v1043
    %v1045 = vrot.slane %v1044, 1
    %v1046 = vadd.f32 %v1044, %v1045
    %v1047 = vadd.f32 %v977, %v1046
    %1048 = vst [vmem:[#allocation4] sm:$0x1] %v1047
    %v1049 = vld [vmem:[#allocation6] sm:$0x1]
    %v1050 = vmul.f32 %v403, %v403
    %v1051 = vmul.f32 %v406, %v406
    %v1052 = vmul.f32 %v411, %v411
    %v1053 = vmul.f32 %v414, %v414
    %v1054 = vmul.f32 %v419, %v419
    %v1055 = vmul.f32 %v422, %v422
    %v1056 = vmul.f32 %v427, %v427
    %v1057 = vmul.f32 %v430, %v430
    %v1058 = vmul.f32 %v435, %v435
    %v1059 = vmul.f32 %v438, %v438
    %v1060 = vmul.f32 %v443, %v443
    %v1061 = vmul.f32 %v446, %v446
    %v1062 = vmul.f32 %v451, %v451
    %v1063 = vmul.f32 %v454, %v454
    %v1064 = vmul.f32 %v459, %v459
    %v1065 = vmul.f32 %v462, %v462
    %v1066 = vmul.f32 %v467, %v467
    %v1067 = vmul.f32 %v470, %v470
    %v1068 = vmul.f32 %v475, %v475
    %v1069 = vmul.f32 %v478, %v478
    %v1070 = vmul.f32 %v483, %v483
    %v1071 = vmul.f32 %v486, %v486
    %v1072 = vmul.f32 %v491, %v491
    %v1073 = vmul.f32 %v494, %v494
    %v1074 = vmul.f32 %v499, %v499
    %v1075 = vmul.f32 %v502, %v502
    %v1076 = vmul.f32 %v507, %v507
    %v1077 = vmul.f32 %v510, %v510
    %v1078 = vmul.f32 %v515, %v515
    %v1079 = vmul.f32 %v518, %v518
    %v1080 = vmul.f32 %v523, %v523
    %v1081 = vmul.f32 %v526, %v526
    %v1082 = vmul.f32 %v531, %v531
    %v1083 = vmul.f32 %v534, %v534
    %v1084 = vmul.f32 %v539, %v539
    %v1085 = vmul.f32 %v542, %v542
    %v1086 = vmul.f32 %v547, %v547
    %v1087 = vmul.f32 %v550, %v550
    %v1088 = vmul.f32 %v555, %v555
    %v1089 = vmul.f32 %v558, %v558
    %v1090 = vmul.f32 %v563, %v563
    %v1091 = vmul.f32 %v566, %v566
    %v1092 = vmul.f32 %v571, %v571
    %v1093 = vmul.f32 %v574, %v574
    %v1094 = vmul.f32 %v579, %v579
    %v1095 = vmul.f32 %v582, %v582
    %v1096 = vmul.f32 %v587, %v587
    %v1097 = vmul.f32 %v590, %v590
    %v1098 = vmul.f32 %v595, %v595
    %v1099 = vmul.f32 %v598, %v598
    %v1100 = vmul.f32 %v603, %v603
    %v1101 = vmul.f32 %v606, %v606
    %v1102 = vmul.f32 %v611, %v611
    %v1103 = vmul.f32 %v614, %v614
    %v1104 = vmul.f32 %v619, %v619
    %v1105 = vmul.f32 %v622, %v622
    %v1106 = vmul.f32 %v627, %v627
    %v1107 = vmul.f32 %v630, %v630
    %v1108 = vmul.f32 %v635, %v635
    %v1109 = vmul.f32 %v638, %v638
    %v1110 = vmul.f32 %v643, %v643
    %v1111 = vmul.f32 %v646, %v646
    %v1112 = vmul.f32 %v651, %v651
    %v1113 = vmul.f32 %v654, %v654
    %v1114 = vadd.f32 %v1050, %v1051
    %v1115 = vadd.f32 %v1114, %v1052
    %v1116 = vadd.f32 %v1115, %v1053
    %v1117 = vadd.f32 %v1116, %v1054
    %v1118 = vadd.f32 %v1117, %v1055
    %v1119 = vadd.f32 %v1118, %v1056
    %v1120 = vadd.f32 %v1119, %v1057
    %v1121 = vadd.f32 %v1120, %v1058
    %v1122 = vadd.f32 %v1121, %v1059
    %v1123 = vadd.f32 %v1122, %v1060
    %v1124 = vadd.f32 %v1123, %v1061
    %v1125 = vadd.f32 %v1124, %v1062
    %v1126 = vadd.f32 %v1125, %v1063
    %v1127 = vadd.f32 %v1126, %v1064
    %v1128 = vadd.f32 %v1127, %v1065
    %v1129 = vadd.f32 %v1128, %v1066
    %v1130 = vadd.f32 %v1129, %v1067
    %v1131 = vadd.f32 %v1130, %v1068
    %v1132 = vadd.f32 %v1131, %v1069
    %v1133 = vadd.f32 %v1132, %v1070
    %v1134 = vadd.f32 %v1133, %v1071
    %v1135 = vadd.f32 %v1134, %v1072
    %v1136 = vadd.f32 %v1135, %v1073
    %v1137 = vadd.f32 %v1136, %v1074
    %v1138 = vadd.f32 %v1137, %v1075
    %v1139 = vadd.f32 %v1138, %v1076
    %v1140 = vadd.f32 %v1139, %v1077
    %v1141 = vadd.f32 %v1140, %v1078
    %v1142 = vadd.f32 %v1141, %v1079
    %v1143 = vadd.f32 %v1142, %v1080
    %v1144 = vadd.f32 %v1143, %v1081
    %v1145 = vadd.f32 %v1144, %v1082
    %v1146 = vadd.f32 %v1145, %v1083
    %v1147 = vadd.f32 %v1146, %v1084
    %v1148 = vadd.f32 %v1147, %v1085
    %v1149 = vadd.f32 %v1148, %v1086
    %v1150 = vadd.f32 %v1149, %v1087
    %v1151 = vadd.f32 %v1150, %v1088
    %v1152 = vadd.f32 %v1151, %v1089
    %v1153 = vadd.f32 %v1152, %v1090
    %v1154 = vadd.f32 %v1153, %v1091
    %v1155 = vadd.f32 %v1154, %v1092
    %v1156 = vadd.f32 %v1155, %v1093
    %v1157 = vadd.f32 %v1156, %v1094
    %v1158 = vadd.f32 %v1157, %v1095
    %v1159 = vadd.f32 %v1158, %v1096
    %v1160 = vadd.f32 %v1159, %v1097
    %v1161 = vadd.f32 %v1160, %v1098
    %v1162 = vadd.f32 %v1161, %v1099
    %v1163 = vadd.f32 %v1162, %v1100
    %v1164 = vadd.f32 %v1163, %v1101
    %v1165 = vadd.f32 %v1164, %v1102
    %v1166 = vadd.f32 %v1165, %v1103
    %v1167 = vadd.f32 %v1166, %v1104
    %v1168 = vadd.f32 %v1167, %v1105
    %v1169 = vadd.f32 %v1168, %v1106
    %v1170 = vadd.f32 %v1169, %v1107
    %v1171 = vadd.f32 %v1170, %v1108
    %v1172 = vadd.f32 %v1171, %v1109
    %v1173 = vadd.f32 %v1172, %v1110
    %v1174 = vadd.f32 %v1173, %v1111
    %v1175 = vadd.f32 %v1174, %v1112
    %v1176 = vadd.f32 %v1175, %v1113
    %v1177 = vrot.slane %v1176, 4
    %v1178 = vadd.f32 %v1176, %v1177
    %v1179 = vrot.slane %v1178, 2
    %v1180 = vadd.f32 %v1178, %v1179
    %v1181 = vrot.slane %v1180, 1
    %v1182 = vadd.f32 %v1180, %v1181
    %v1183 = vadd.f32 %v1049, %v1182
    %1184 = vst [vmem:[#allocation6] sm:$0x1] %v1183
    // Predicated region
    $region14: #{tpu_custom_call.1} parent=1 // pred_check
      _
    $region15: #{tpu_custom_call.1} parent=1 // pred_check_branch
      %1186 = sbr.rel (0) target = $region17
    $region16: #{tpu_custom_call.1} parent=1 // pred_region
      %s1188 = ssub.s32 4096, 4096
      %1189 = vsyncadd [#allocation3], %s1188
      %s1190 = sshll.u32 [#allocation2], 4
      %s1191 = int_to_ptr.vmem [resolvable:$true] %s1190
      %1196 = dma.vmem_to_hbm [thread:$0]  %s1191, 4096, %s2, [#allocation3], 64, 64, 4
    $region17: #{tpu_custom_call.1} parent=1 // pred_fallthru
      _
    // Predicated region
    $region18: #{tpu_custom_call.1} parent=1 // pred_check
      _
    $region19: #{tpu_custom_call.1} parent=1 // pred_check_branch
      %1198 = sbr.rel (0) target = $region21
    $region20: #{tpu_custom_call.1} parent=1 // pred_region
      %s1200 = ssub.s32 16, 16
      %1201 = vsyncadd [#allocation5], %s1200
      %s1203 = sshll.u32 [#allocation4], 4
      %s1204 = int_to_ptr.vmem [resolvable:$true] %s1203
      %1206 = dma.vmem_to_hbm [thread:$0]  %s1204, 16, %s3, [#allocation5]
    $region21: #{tpu_custom_call.1} parent=1 // pred_fallthru
      _
    // Predicated region
    $region22: #{tpu_custom_call.1} parent=1 // pred_check
      _
    $region23: #{tpu_custom_call.1} parent=1 // pred_check_branch
      %1208 = sbr.rel (0) target = $region25
    $region24: #{tpu_custom_call.1} parent=1 // pred_region
      %s1210 = ssub.s32 16, 16
      %1211 = vsyncadd [#allocation5], %s1210
      %s1213 = sshll.u32 [#allocation6], 4
      %s1214 = int_to_ptr.vmem [resolvable:$true] %s1213
      %1216 = dma.vmem_to_hbm [thread:$0]  %s1214, 16, %s4, [#allocation5]
    $region25: #{tpu_custom_call.1} parent=1 // pred_fallthru
      _
    // Predicated region
    $region26: #{tpu_custom_call.1} parent=1 // pred_check
      _
    $region27: #{tpu_custom_call.1} parent=1 // pred_check_branch
      %1218 = sbr.rel (0) target = $region29
    $region28: #{tpu_custom_call.1} parent=1 // pred_region
      %1219 = dma.done [#allocation3], 4096
    $region29: #{tpu_custom_call.1} parent=1 // pred_fallthru
      _
    // Predicated region
    $region30: #{tpu_custom_call.1} parent=1 // pred_check
      _
    $region31: #{tpu_custom_call.1} parent=1 // pred_check_branch
      %1221 = sbr.rel (0) target = $region33
    $region32: #{tpu_custom_call.1} parent=1 // pred_region
      %1222 = dma.done [#allocation5], 16
    $region33: #{tpu_custom_call.1} parent=1 // pred_fallthru
      _
    // Predicated region
    $region34: #{tpu_custom_call.1} parent=1 // pred_check
      _
    $region35: #{tpu_custom_call.1} parent=1 // pred_check_branch
      %1224 = sbr.rel (0) target = $region37
    $region36: #{tpu_custom_call.1} parent=1 // pred_region
      %1225 = dma.done [#allocation5], 16
    $region37: #{tpu_custom_call.1} parent=1 // pred_fallthru
      _
    %1226 = vsyncpa [#allocation3], 1
    %1227 = vsyncpa [#allocation5], 1

</llo_original>
